<compile_context>
chip_gen: v6e
topology: v6e:2x2x1
jax: 0.10.0
libtpu: 0.0.40
codegen_flags: <defaults>
</compile_context>

<pallas_src>
import functools
import math

import jax
import jax.numpy as jnp
from jax.experimental import pallas as pl
from jax.experimental.pallas import tpu as pltpu


_VMEM_LIMIT_BYTES = 32 << 20   # raise v5e's 16 MiB default scoped VMEM limit
_STAGE1_TILE_BYTES = 6 << 20   # only the input stream is double-buffered (~2x block)
_STAGE3_TILE_BYTES = 5 << 20   # input + output double-buffered (~4x block)


# ---------------------------------------------------------------------------
# Kernels
# ---------------------------------------------------------------------------

def _pool_sum_kernel(x_ref, psum_ref, *, hw, tile, tiles_per_split, needs_mask):
    """Accumulate per-channel spatial sums.  x_ref: (C, T); psum_ref: (C, 1) f32."""
    t = pl.program_id(2)

    @pl.when(t == 0)
    def _():
        psum_ref[...] = jnp.zeros_like(psum_ref)

    x = x_ref[...].astype(jnp.float32)
    if needs_mask:
        # Last spatial block is partial: zero the out-of-range lanes before
        # summing (reads past the array are padding garbage).
        s = pl.program_id(1)
        start = (s * tiles_per_split + t) * tile
        lane = jax.lax.broadcasted_iota(jnp.int32, x.shape, 1)
        x = jnp.where(start + lane < hw, x, 0.0)
    psum_ref[...] += jnp.sum(x, axis=1, keepdims=True)


def _scale_kernel(x_ref, attn_ref, o_ref):
    """Broadcast channel scaling.  x_ref: (C, T); attn_ref: (C, 1) f32; o_ref: (C, T)."""
    # f32 multiply + single cast of the product matches the reference's rounding
    # for bf16 inputs; identical to a plain multiply for f32 inputs.
    o_ref[...] = (x_ref[...].astype(jnp.float32) * attn_ref[...]).astype(o_ref.dtype)


# ---------------------------------------------------------------------------
# Parameter / tiling helpers
# ---------------------------------------------------------------------------

def eca_block_params(channel, b=1, gammma=2, key=jax.random.PRNGKey(42)):
    # Faithfully mirror the module's kernel-size / padding arithmetic
    # (padding uses the *pre-odd-adjusted* size, as in the PyTorch code).
    kernal_size = int(abs((math.log(channel, 2) + b) / gammma))
    kernel_size = kernal_size if kernal_size % 2 else kernal_size + 1
    padding = kernal_size // 2
    # Conv1d(1, 1, K, bias=False) weight -> (K,), deterministic uniform init.
    bound = 1.0 / math.sqrt(kernel_size)
    w = jax.random.uniform(key, (kernel_size,), jnp.float32, -bound, bound)
    return w, kernel_size, padding


def _pick_spatial_tile(hw, c, itemsize, budget_bytes):
    """Spatial tile: full extent if it fits the budget, else the largest
    128-lane multiple within the budget (preferring an exact divisor of hw)."""
    c_pad = max(8, -(-c // 8) * 8)                       # sublane padding of the block
    max_t = (budget_bytes // (c_pad * itemsize)) // 128 * 128
    if max_t < 128:
        max_t = 128                                      # minimum lane-dense tile
    if max_t >= hw:
        return hw                                        # single full-extent block (always legal)
    # Prefer an exact 128-multiple divisor (no masked tail) if it does not
    # shrink the tile by more than 2x; otherwise use a cdiv grid with a tail.
    for cand in range(max_t, 127, -128):
        if hw % cand == 0:
            if 2 * cand >= max_t:
                return cand
            break
    return max_t


# ---------------------------------------------------------------------------
# Forward
# ---------------------------------------------------------------------------

def eca_block_forward(x_nchw, w, padding, *,
                      stage1_tile_bytes=_STAGE1_TILE_BYTES,
                      stage3_tile_bytes=_STAGE3_TILE_BYTES):
    B, C, H, W = x_nchw.shape
    HW = H * W
    K = w.shape[0]

    x = x_nchw.reshape(B, C, HW)                         # free reshape, no transpose
    itemsize = jnp.dtype(x_nchw.dtype).itemsize

    # ---- Stage 1: streamed pooled channel sums (Pallas) -------------------
    T1 = _pick_spatial_tile(HW, C, itemsize, stage1_tile_bytes)
    n_tiles1 = pl.cdiv(HW, T1)
    # Give the 2nd v7x TensorCore work even when B == 1 by splitting the
    # spatial reduction into two parallel halves (partial sums combined below).
    n_splits = 2 if (n_tiles1 >= 2 and n_tiles1 % 2 == 0) else 1
    tiles_per_split = n_tiles1 // n_splits
    needs_mask = (HW % T1) != 0

    pool_kernel = functools.partial(
        _pool_sum_kernel, hw=HW, tile=T1,
        tiles_per_split=tiles_per_split, needs_mask=needs_mask)

    pooled_sum = pl.pallas_call(
        pool_kernel,
        out_shape=jax.ShapeDtypeStruct((B, n_splits, C, 1), jnp.float32),
        grid_spec=pltpu.PrefetchScalarGridSpec(
            num_scalar_prefetch=0,
            grid=(B, n_splits, tiles_per_split),
            in_specs=[pl.BlockSpec(
                (None, C, T1),
                lambda b, s, t: (b, 0, s * tiles_per_split + t))],
            out_specs=pl.BlockSpec((None, None, C, 1),
                                   lambda b, s, t: (b, s, 0, 0)),
        ),
        compiler_params=pltpu.CompilerParams(
            dimension_semantics=("parallel", "parallel", "arbitrary"),
            vmem_limit_bytes=_VMEM_LIMIT_BYTES),
    )(x)

    # ---- Stage 2: tiny K-tap channel conv + sigmoid (parameter glue, JAX) --
    pooled = pooled_sum.sum(axis=1)[:, :, 0] / HW                # (B, C)  avg-pool(1)
    padded = jnp.pad(pooled, ((0, 0), (padding, padding)))       # (B, C + 2p)
    conv = sum(w[t] * padded[:, t:t + C] for t in range(K))      # (B, C)  cross-corr
    attn = jax.nn.sigmoid(conv)[:, :, None].astype(jnp.float32)  # (B, C, 1)

    # ---- Stage 3: streamed broadcast scale in native layout (Pallas) ------
    T3 = _pick_spatial_tile(HW, C, itemsize, stage3_tile_bytes)
    n_tiles3 = pl.cdiv(HW, T3)

    out = pl.pallas_call(
        _scale_kernel,
        out_shape=jax.ShapeDtypeStruct((B, C, HW), x_nchw.dtype),
        grid_spec=pltpu.PrefetchScalarGridSpec(
            num_scalar_prefetch=0,
            grid=(B, n_tiles3),
            in_specs=[
                pl.BlockSpec((None, C, T3), lambda b, t: (b, 0, t)),
                pl.BlockSpec((None, C, 1), lambda b, t: (b, 0, 0)),
            ],
            out_specs=pl.BlockSpec((None, C, T3), lambda b, t: (b, 0, t)),
        ),
        compiler_params=pltpu.CompilerParams(
            dimension_semantics=("parallel", "parallel"),
            vmem_limit_bytes=_VMEM_LIMIT_BYTES),
    )(x, attn)

    return out.reshape(B, C, H, W)


# ---------------------------------------------------------------------------
# Pure-JAX reference (mirrors the PyTorch forward)
# ---------------------------------------------------------------------------

def eca_block_reference(x_nchw, w, padding):
    B, C, H, W = x_nchw.shape
    K = w.shape[0]
    pooled = jnp.mean(x_nchw.astype(jnp.float32), axis=(2, 3))   # (B, C)
    padded = jnp.pad(pooled, ((0, 0), (padding, padding)))       # (B, C + 2p)
    conv = sum(w[t] * padded[:, t:t + C] for t in range(K))      # (B, C)
    attn = jax.nn.sigmoid(conv)[:, :, None, None]                # (B, C, 1, 1)
    return (attn * x_nchw).astype(x_nchw.dtype)


if __name__ == "__main__":
    key = jax.random.PRNGKey(0)

    tests = [
        # (shape, dtype, tile-budget overrides)
        ((2, 4, 16, 16), jnp.float32, {}),
        ((2, 64, 16, 16), jnp.float32, {}),
        ((2, 64, 16, 16), jnp.bfloat16, {}),
        # Non-128-divisible HW with tiny tile budgets: exercises the masked-tail
        # reduction, the 2-way Stage-1 spatial split, and Stage-3 partial blocks.
        ((1, 64, 14, 14), jnp.float32,
         dict(stage1_tile_bytes=32 << 10, stage3_tile_bytes=32 << 10)),
    ]

    for (B, C, H, W), dtype, budgets in tests:
        kx, key = jax.random.split(key)
        x = jax.random.normal(kx, (B, C, H, W), jnp.float32).astype(dtype)

        w, kernel_size, padding = eca_block_params(C)

        out = jax.block_until_ready(eca_block_forward(x, w, padding, **budgets))
        ref = eca_block_reference(x, w, padding)

        assert out.shape == (B, C, H, W), out.shape
        tol = 1e-5 if dtype == jnp.float32 else 2e-2
        assert jnp.allclose(out.astype(jnp.float32), ref.astype(jnp.float32),
                            atol=tol, rtol=tol), \
            f"mismatch vs reference for C={C}, dtype={dtype}"

    print("KERNEL_OK")
</pallas_src>

<mosaic_0001>
module attributes {stable_mosaic.version = 11 : i64} {
  func.func @_pool_sum_kernel(%arg0: i32, %arg1: i32, %arg2: i32, %arg3: memref<1x4x256xf32, #tpu.memory_space<vmem>>, %arg4: memref<1x1x4x1xf32, #tpu.memory_space<vmem>>) attributes {dimension_semantics = [#tpu.dimension_semantics<parallel>, #tpu.dimension_semantics<parallel>, #tpu.dimension_semantics<arbitrary>], iteration_bounds = array<i64: 2, 1, 1>, scalar_prefetch = 0 : i64, scratch_operands = 0 : i64, tpu.core_type = #tpu.core_type<tc>, window_params = [{transform_indices = @transform_0, window_bounds = array<i64: 1, 4, 256>}, {transform_indices = @transform_1, window_bounds = array<i64: 1, 1, 4, 1>}]} {
    %c0_i32 = arith.constant 0 : i32
    %0 = arith.cmpi eq, %arg2, %c0_i32 : i32
    %1 = arith.extui %0 : i1 to i32
    %c0_i32_0 = arith.constant 0 : i32
    %2 = arith.cmpi ne, %1, %c0_i32_0 : i32
    scf.if %2 {
      %cst_11 = arith.constant 0.000000e+00 : f32
      %13 = vector.broadcast %cst_11 : f32 to vector<4x1xf32>
      %c0_12 = arith.constant 0 : index
      %c0_13 = arith.constant 0 : index
      %c0_14 = arith.constant 0 : index
      %c0_15 = arith.constant 0 : index
      %14 = vector.load %arg4[%c0_12, %c0_13, %c0_14, %c0_15] : memref<1x1x4x1xf32, #tpu.memory_space<vmem>>, vector<1x1x4x1xf32>
      %15 = vector.shape_cast %14 : vector<1x1x4x1xf32> to vector<4x1xf32>
      %16 = vector.shape_cast %13 : vector<4x1xf32> to vector<1x1x4x1xf32>
      tpu.vector_store %arg4[%c0_12, %c0_13, %c0_14, %c0_15], %16 {strides = array<i32>} : memref<1x1x4x1xf32, #tpu.memory_space<vmem>>, vector<1x1x4x1xf32>,
    } else {
    }
    %c0 = arith.constant 0 : index
    %c0_1 = arith.constant 0 : index
    %c0_2 = arith.constant 0 : index
    %3 = vector.load %arg3[%c0, %c0_1, %c0_2] : memref<1x4x256xf32, #tpu.memory_space<vmem>>, vector<1x4x256xf32>
    %4 = vector.shape_cast %3 : vector<1x4x256xf32> to vector<4x256xf32>
    %c0_3 = arith.constant 0 : index
    %c0_4 = arith.constant 0 : index
    %c0_5 = arith.constant 0 : index
    %c0_6 = arith.constant 0 : index
    %5 = vector.load %arg4[%c0_3, %c0_4, %c0_5, %c0_6] : memref<1x1x4x1xf32, #tpu.memory_space<vmem>>, vector<1x1x4x1xf32>
    %6 = vector.shape_cast %5 : vector<1x1x4x1xf32> to vector<4x1xf32>
    %cst = arith.constant dense<0.000000e+00> : vector<4xf32>
    %7 = vector.multi_reduction <add>, %4, %cst [1] : vector<4x256xf32> to vector<4xf32>
    %8 = vector.shape_cast %7 : vector<4xf32> to vector<4x1xf32>
    %9 = arith.addf %6, %8 : vector<4x1xf32>
    %c0_7 = arith.constant 0 : index
    %c0_8 = arith.constant 0 : index
    %c0_9 = arith.constant 0 : index
    %c0_10 = arith.constant 0 : index
    %10 = vector.load %arg4[%c0_7, %c0_8, %c0_9, %c0_10] : memref<1x1x4x1xf32, #tpu.memory_space<vmem>>, vector<1x1x4x1xf32>
    %11 = vector.shape_cast %10 : vector<1x1x4x1xf32> to vector<4x1xf32>
    %12 = vector.shape_cast %9 : vector<4x1xf32> to vector<1x1x4x1xf32>
    tpu.vector_store %arg4[%c0_7, %c0_8, %c0_9, %c0_10], %12 {strides = array<i32>} : memref<1x1x4x1xf32, #tpu.memory_space<vmem>>, vector<1x1x4x1xf32>,
    return
  }
  func.func @transform_0(%arg0: i32, %arg1: i32, %arg2: i32) -> (i32, i32, i32) {
    %c1_i32 = arith.constant 1 : i32
    %0 = arith.muli %arg1, %c1_i32 : i32
    %1 = arith.addi %0, %arg2 : i32
    %c0_i32 = arith.constant 0 : i32
    %c0_i32_0 = arith.constant 0 : i32
    return %arg0, %c0_i32, %1 : i32, i32, i32
  }
  func.func @transform_1(%arg0: i32, %arg1: i32, %arg2: i32) -> (i32, i32, i32, i32) {
    %c0_i32 = arith.constant 0 : i32
    %c0_i32_0 = arith.constant 0 : i32
    %c0_i32_1 = arith.constant 0 : i32
    return %arg0, %arg1, %c0_i32, %c0_i32_0 : i32, i32, i32, i32
  }
}

</mosaic_0001>

<llo_original>
// kernel: tpu_custom_call.1
$region0: #{tpu_custom_call.1}
  #allocation0 [shape = 'u32[]', space=smem, size = 0x4, offset = 0x4, fixed_abs, tag = 'smem constant byte address 0x4 - core index']
  #allocation1 [shape = 'u32[144,128]{1,0:T(1,128)}', space=vmem, size = 0x12000, scoped, tag = 'internal scratch']
  %s0 = inlined_call_operand.hbm [shape: f32[2,4,256], index: 0, kind: input, shape index: {}]
  %s1 = inlined_call_operand.vmem [shape: f32[2,1,4,1], index: 1, kind: output, shape index: {}]
  %s2 = sld [smem:[#allocation0]]
  $region45: #{tpu_custom_call.1} parent=0
    _
  %s4 = ssub.s32 1, %s2
  %s5 = scalar_select 0, %s4, %s2
  $region1: #{tpu_custom_call.1} parent=0
    #allocation2 [shape = 'u8[8192]{0}', space=vmem, size = 0x2000, scoped, tag = 'input window, operand 0']
    #allocation3 [shape = 's32[2]{0}', space=sflag, size = 0x8, scoped, tag = 'scoped memory for tpu_custom_call.1']
    %6 = vsyncpa [#allocation3], 0
    %s7 = scalar_lea.sflag [#allocation3], 1
    %8 = vsyncpa %s7, 0
    loop: start=0, step=1, limit=4
    $region2: #{tpu_custom_call.1} parent=1 // loop_pre_header
      _
    $region3: #{tpu_custom_call.1} parent=1 // loop_header
      %s10 = sphi 0, %s14
      %p11 = scmp.ge.s32.totalorder %s10, 4
      %s17 = sphi 0, %s36
      %s18 = sphi 0, %s32
      %s19 = sphi 0, %s28
      %s20 = sphi 0, %s17
      %s21 = sphi 0, %s18
      %s22 = sphi 0, %s19
      %s23 = sphi 0, %s20
      %s24 = sphi 0, %s21
      %s25 = sphi 0, %s22
      %s43 = sphi 0, %s45
      %s46 = sphi 0, %s43
      %s47 = sphi 0, %s46
      %s63 = sphi 0, %s47
      %s71 = sphi 0, %s73
      %s74 = sphi 0, %s71
      %s75 = sphi 0, %s74
      %s91 = sphi 0, %s75
    $region4: #{tpu_custom_call.1} parent=1 // loop_header_branch
      %13 = sbr.rel (%p11) target = $region8
    $region5: #{tpu_custom_call.1} parent=1 // loop_body
      %s15 = ssub.s32 %s10, 1
      %s16 = ssub.s32 %s10, 2
      %s26 = sadd.s32 1, %s19
      %p27 = scmp.ge.s32.totalorder %s26, 1
      %s28 = scalar_select %p27, 0, %s26
      %s29 = sadd.s32 1, %s18
      %s30 = scalar_select %p27, %s29, %s18
      %p31 = scmp.ge.s32.totalorder %s30, 1
      %s32 = scalar_select %p31, 0, %s30
      %s33 = sadd.s32 1, %s17
      %s34 = scalar_select %p31, %s33, %s17
      %p35 = scmp.ge.s32.totalorder %s34, 2
      %s36 = scalar_select %p35, 0, %s34
      %s37 = sadd.s32 %s18, %s19
      %s38 = sadd.s32 %s32, %s28
      %s39 = ssub.s32 %s17, %s36
      %s40 = ssub.s32 %s37, %s38
      %s41 = sor.u32 %s39, %s40
      %p42 = scmp.eq.s32.totalorder %s41, 0
      %s44 = sadd.s32 %s43, 1
      %s45 = scalar_select %p42, %s43, %s44
      %p48 = pneg %p42
      %p49 = scmp.eq.s32.totalorder %s10, 1
      %p50 = por %p48, %p49
      %p51 = scmp.ne.s32.totalorder %s43, %s46
      %p52 = scmp.eq.s32.totalorder %s10, 0
      %p53 = por %p51, %p52
      %p54 = scmp.ne.s32.totalorder %s43, %s46
      %p55 = scmp.eq.s32.totalorder %s15, 1
      %p56 = por %p54, %p55
      %p57 = scmp.ne.s32.totalorder %s46, %s47
      %p58 = scmp.eq.s32.totalorder %s15, 0
      %p59 = por %p57, %p58
      %p60 = scmp.ne.s32.totalorder %s46, %s47
      %p61 = scmp.eq.s32.totalorder %s16, 1
      %p62 = por %p60, %p61
      %p64 = scmp.ne.s32.totalorder %s47, %s63
      %p65 = scmp.eq.s32.totalorder %s16, 0
      %p66 = por %p64, %p65
      %s67 = ssub.s32 %s17, %s36
      %s68 = ssub.s32 %s18, %s32
      %s69 = sor.u32 %s67, %s68
      %p70 = scmp.eq.s32.totalorder %s69, 0
      %s72 = sadd.s32 %s71, 1
      %s73 = scalar_select %p70, %s71, %s72
      %p76 = pneg %p70
      %p77 = scmp.eq.s32.totalorder %s10, 1
      %p78 = por %p76, %p77
      %p79 = scmp.ne.s32.totalorder %s71, %s74
      %p80 = scmp.eq.s32.totalorder %s10, 0
      %p81 = por %p79, %p80
      %p82 = scmp.ne.s32.totalorder %s71, %s74
      %p83 = scmp.eq.s32.totalorder %s15, 1
      %p84 = por %p82, %p83
      %p85 = scmp.ne.s32.totalorder %s74, %s75
      %p86 = scmp.eq.s32.totalorder %s15, 0
      %p87 = por %p85, %p86
      %p88 = scmp.ne.s32.totalorder %s74, %s75
      %p89 = scmp.eq.s32.totalorder %s16, 1
      %p90 = por %p88, %p89
      %p92 = scmp.ne.s32.totalorder %s75, %s91
      %p93 = scmp.eq.s32.totalorder %s16, 0
      %p94 = por %p92, %p93
      %p95 = scmp.le.s32.totalorder 1, %s10
      %p96 = scmp.lt.s32.totalorder %s10, 3
      %p97 = pnand %p95, %p96
      %p98 = pneg %p97
      // Predicated region
      $region9: #{tpu_custom_call.1} parent=5 // pred_check
        _
      $region10: #{tpu_custom_call.1} parent=5 // pred_check_branch
        %100 = sbr.rel (%p97) target = $region12
      $region11: #{tpu_custom_call.1} parent=5 // pred_region
        %s101 = ssub.s32 %s10, 1
      $region12: #{tpu_custom_call.1} parent=5 // pred_fallthru
        _
      %p102 = scmp.lt.s32.totalorder %s10, 2
      // Predicated region
      $region13: #{tpu_custom_call.1} parent=5 // pred_check
        %p103 = pneg %p102
      $region14: #{tpu_custom_call.1} parent=5 // pred_check_branch
        %105 = sbr.rel (%p103) target = $region16
      $region15: #{tpu_custom_call.1} parent=5 // pred_region
        // Predicated region
        $region17: #{tpu_custom_call.1} parent=15 // pred_check
          %p106 = pneg %p53
        $region18: #{tpu_custom_call.1} parent=15 // pred_check_branch
          %108 = sbr.rel (%p106) target = $region20
        $region19: #{tpu_custom_call.1} parent=15 // pred_region
          %s109 = sand.u32 %s43, 1
          %s110 = scalar_lea.sflag [#allocation3], %s109
          %s111 = sand.u32 %s43, 1
          %s112 = smul.addr %s111, 8
          %s113 = scalar_lea.vmem [#allocation2], %s112
          %s114 = sadd.s32 %s18, %s19
          %s115 = smul.u32 2, %s114
          %s117 = ssub.s32 128, 128
          %118 = vsyncadd %s110, %s117
          %s119 = smul.addr %s17, 2
          %s120 = sadd.s32 %s115, %s119
          %s121 = smul.addr %s120, 64
          %s122 = scalar_lea.hbm %s0, %s121
          %s124 = sshll.u32 %s113, 4
          %s125 = int_to_ptr.vmem [resolvable:$true] %s124
          %127 = dma.hbm_to_vmem [thread:$0]  %s122, 128, %s125, %s110
        $region20: #{tpu_custom_call.1} parent=15 // pred_fallthru
          _
      $region16: #{tpu_custom_call.1} parent=5 // pred_fallthru
        _
      %p128 = scmp.le.s32.totalorder 1, %s10
      %p129 = scmp.lt.s32.totalorder %s10, 3
      %p130 = pnand %p128, %p129
      %p131 = pneg %p130
      // Predicated region
      $region21: #{tpu_custom_call.1} parent=5 // pred_check
        _
      $region22: #{tpu_custom_call.1} parent=5 // pred_check_branch
        %133 = sbr.rel (%p130) target = $region24
      $region23: #{tpu_custom_call.1} parent=5 // pred_region
        %s134 = ssub.s32 %s10, 1
        %s135 = sand.u32 %s46, 1
        %s136 = scalar_lea.sflag [#allocation3], %s135
        %s137 = sand.u32 %s46, 1
        %s138 = smul.addr %s137, 8
        %s139 = scalar_lea.vmem [#allocation2], %s138
        // Predicated region
        $region25: #{tpu_custom_call.1} parent=23 // pred_check
          %p140 = pneg %p59
        $region26: #{tpu_custom_call.1} parent=23 // pred_check_branch
          %142 = sbr.rel (%p140) target = $region28
        $region27: #{tpu_custom_call.1} parent=23 // pred_region
          %143 = dma.done %s136, 128
        $region28: #{tpu_custom_call.1} parent=23 // pred_fallthru
          _
        %s144 = sand.u32 %s46, 1
        %s145 = scalar_lea.sflag [#allocation3], %s144
        %s146 = sand.u32 %s46, 1
        %s147 = smul.addr %s146, 8
        %s148 = scalar_lea.vmem [#allocation2], %s147
        %p149 = pneg %p59
        %p150 = pneg %p56
        %p151 = pneg %p87
        %p152 = pneg %p84
        %p153 = scmp.lt.s32.totalorder %s20, 1
        %s154 = scalar_select %p153, %s20, 1
        %p155 = scmp.lt.s32.totalorder %s21, 0
        %s156 = scalar_select %p155, %s21, 0
        %s157 = sadd.s32 %s156, %s154
        %s158 = smul.addr %s157, 4
        %s159 = scalar_lea.vmem %s1, %s158
        %s160 = sadd.s32 %s21, %s22
        %s161 = smul.u32 2, %s160
        %p162 = scmp.lt.s32.totalorder %s20, 1
        %s163 = scalar_select %p162, %s20, 1
        %p164 = scmp.lt.s32.totalorder %s21, 0
        %s165 = scalar_select %p164, %s21, 0
        %s166 = sadd.s32 %s165, %s163
        %s167 = smul.addr %s166, 4
        %s168 = scalar_lea.vmem %s1, %s167
        %p169 = scmp.eq.s32.totalorder %s22, 0
        // Predicated region
        $region29: #{tpu_custom_call.1} parent=23 // pred_check
          %p170 = pneg %p169
        $region30: #{tpu_custom_call.1} parent=23 // pred_check_branch
          %172 = sbr.rel (%p170) target = $region32
        $region31: #{tpu_custom_call.1} parent=23 // pred_region
          %vm173 = vcmask 3072
          %174 = vst.msk [vmem:[%s168] sm:$0xf] %vm173, 0.0
        $region32: #{tpu_custom_call.1} parent=23 // pred_fallthru
          _
        %v175 = vld [vmem:[%s139] sm:$0xff]
        %v176 = vld [vmem:[%s168] sm:$0xf]
        %v178 = vcombine.high %v175, %v175
        %vm180 = vcmask 1043456
        %v181 = vsel %vm180, %v175, 0.0
        %v182 = vsel %vm180, %v178, 0.0
        %v183 = vadd.f32 %v181, %v182
        %184 = vadd.xlane.f32.xlu0 %v183
        %v185 = vpop.xlane.xlu0 %184
        %v186 = vadd.f32 %v176, %v185
        %vm187 = vcmask 3072
        %188 = vst.msk [vmem:[%s168] sm:$0xf] %vm187, %v186
        %p189 = scmp.lt.s32.totalorder %s20, 1
        %s190 = scalar_select %p189, %s20, 1
        %p191 = scmp.lt.s32.totalorder %s21, 0
        %s192 = scalar_select %p191, %s21, 0
        %s193 = sadd.s32 %s192, %s190
        %s194 = smul.addr %s193, 4
        %s195 = scalar_lea.vmem %s1, %s194
        // Predicated region
        $region33: #{tpu_custom_call.1} parent=23 // pred_check
          %p196 = pneg %p84
        $region34: #{tpu_custom_call.1} parent=23 // pred_check_branch
          %198 = sbr.rel (%p196) target = $region36
        $region35: #{tpu_custom_call.1} parent=23 // pred_region
          _
        $region36: #{tpu_custom_call.1} parent=23 // pred_fallthru
          _
      $region24: #{tpu_custom_call.1} parent=5 // pred_fallthru
        _
      %p199 = scmp.le.s32.totalorder 2, %s10
      // Predicated region
      $region37: #{tpu_custom_call.1} parent=5 // pred_check
        %p200 = pneg %p199
      $region38: #{tpu_custom_call.1} parent=5 // pred_check_branch
        %202 = sbr.rel (%p200) target = $region40
      $region39: #{tpu_custom_call.1} parent=5 // pred_region
        %s203 = ssub.s32 %s10, 2
        // Predicated region
        $region41: #{tpu_custom_call.1} parent=39 // pred_check
          %p204 = pneg %p90
        $region42: #{tpu_custom_call.1} parent=39 // pred_check_branch
          %206 = sbr.rel (%p204) target = $region44
        $region43: #{tpu_custom_call.1} parent=39 // pred_region
          %p207 = scmp.lt.s32.totalorder %s23, 1
          %s208 = scalar_select %p207, %s23, 1
          %p209 = scmp.lt.s32.totalorder %s24, 0
          %s210 = scalar_select %p209, %s24, 0
          %s211 = sadd.s32 %s210, %s208
          %s212 = smul.addr %s211, 4
          %s213 = scalar_lea.vmem %s1, %s212
        $region44: #{tpu_custom_call.1} parent=39 // pred_fallthru
          _
      $region40: #{tpu_custom_call.1} parent=5 // pred_fallthru
        _
    $region6: #{tpu_custom_call.1} parent=1 // loop_footer
      %s14 = sadd.s32 1, %s10
    $region7: #{tpu_custom_call.1} parent=1 // loop_footer_branch
      %9 = sbr.rel target = $region3
    $region8: #{tpu_custom_call.1} parent=1 // loop_exit
      _
    %214 = vsyncpa [#allocation3], 1
    %s215 = scalar_lea.sflag [#allocation3], 1
    %216 = vsyncpa %s215, 1

</llo_original>
